<compile_context>
chip_gen: v7x
topology: tpu7x:2x2x1
jax: 0.10.0
libtpu: 0.0.40
codegen_flags: <defaults>
</compile_context>

<pallas_src>
import numpy as np

import jax
import jax.numpy as jnp
from jax.experimental import pallas as pl
from jax.experimental.pallas import tpu as pltpu

# Deterministic parameters of the module (from __init__), baked in-script.
_KV = np.array(
    [[-1.0, 2.0, -2.0, 2.0, -1.0],
     [2.0, -6.0, 8.0, -6.0, 2.0],
     [-2.0, 8.0, -12.0, 8.0, -2.0],
     [2.0, -6.0, 8.0, -6.0, 2.0],
     [-1.0, 2.0, -2.0, 2.0, -1.0]], dtype=np.float64)
_KV_SCALE = 1.0 / 12.0
_PAD = 2

# Rank-2 separable decomposition with exact integer taps:
#   KV[u, v] = A[u] * R1[v] + B[u] * R2[v]
_R1 = (-1.0, 2.0, -2.0, 2.0, -1.0)   # row (W / lane) taps, rank 1
_R2 = (2.0, -6.0, 8.0, -6.0, 2.0)    # row (W / lane) taps, rank 2
_A = (1.0, 0.0, -2.0, 0.0, 1.0)      # column (H / sublane) taps, rank 1
_B = (0.0, 1.0, -2.0, 1.0, 0.0)      # column (H / sublane) taps, rank 2
assert np.allclose(np.outer(_A, _R1) + np.outer(_B, _R2), _KV)


def _kv_conv_kernel(x_ref, o_ref, xpad_ref, t_ref):
    """x_ref/o_ref: (TB, 1, H, W); xpad_ref: (TB, H+4, W+4) f32; t_ref: (TB, 2, H+4, W) f32."""
    tb, _, h, w = x_ref.shape
    f32 = jnp.float32

    # --- Stage the image into a zero-padded VMEM scratch (pad=2 each side).
    # Border strips are rewritten every step (scratch starts uninitialized and
    # there is no cross-step state, keeping the grid axis safely "parallel").
    xpad_ref[:, 0:2, :] = jnp.zeros((tb, 2, w + 4), f32)
    xpad_ref[:, h + 2:h + 4, :] = jnp.zeros((tb, 2, w + 4), f32)
    xpad_ref[:, :, 0:2] = jnp.zeros((tb, h + 4, 2), f32)
    xpad_ref[:, :, w + 2:w + 4] = jnp.zeros((tb, h + 4, 2), f32)
    xpad_ref[:, 2:h + 2, 2:w + 2] = x_ref[:, 0].astype(f32)

    # --- Row pass (lane axis): both rank-1 row filters share the same five
    # lane-shifted loads; integer taps, f32 accumulation on the VPU.
    t1 = jnp.zeros((tb, h + 4, w), f32)
    t2 = jnp.zeros((tb, h + 4, w), f32)
    for k in range(5):
        xs = xpad_ref[:, :, k:k + w]
        t1 = t1 + _R1[k] * xs
        t2 = t2 + _R2[k] * xs
    # Rows 0:2 and H+2:H+4 of t1/t2 are exactly zero (row-conv of the all-zero
    # border rows of xpad), which is precisely the zero padding the column pass
    # needs -- so t_ref is written with full, offset-0 stores.
    t_ref[:, 0] = t1
    t_ref[:, 1] = t2

    # --- Column pass (sublane axis): A and B have only three non-zero integer
    # taps each -> six sublane-shifted loads + VPU MACs.
    acc = jnp.zeros((tb, h, w), f32)
    for k in range(5):
        if _A[k] != 0.0:
            acc = acc + _A[k] * t_ref[:, 0, k:k + h, :]
        if _B[k] != 0.0:
            acc = acc + _B[k] * t_ref[:, 1, k:k + h, :]

    # Single VPU multiply applies the 1/12 KV scale (kept out of the integer taps).
    o_ref[:, 0] = (acc * _KV_SCALE).astype(o_ref.dtype)


def _round_up(a, m):
    return ((a + m - 1) // m) * m


def _pick_batch_block(n, h, w, in_item, out_item):
    """Images per grid step, sized against actual VMEM consumers (with physical
    (8,128) padding), amortizing per-step overhead while keeping >=4 grid steps
    (2 per v7x TensorCore + DMA/compute overlap) when steps stay non-trivial."""
    hs, ws = _round_up(h, 8), _round_up(w, 128)           # in/out block physical tiles
    hps, wps = _round_up(h + 4, 8), _round_up(w + 4, 128)  # padded scratch tiles
    per_image = (
        2 * hs * ws * in_item        # input block, double-buffered
        + 2 * hs * ws * out_item     # output block, double-buffered
        + 4 * hps * wps              # zero-padded image scratch (f32)
        + 4 * 2 * hps * ws           # row-pass intermediate scratch (f32, 2 ranks)
        + 4 * 5 * hs * ws            # headroom: live f32 temporaries (xs, t1, t2, acc, staging)
    )
    budget = 20 * 1024 * 1024        # well under the 48 MiB vmem_limit below (v7x phys = 64 MiB)
    tb = max(1, budget // per_image)
    if n >= 4 and (n // 4) * h * w >= (1 << 16):
        tb = min(tb, n // 4)         # >= 4 grid steps once each step is big enough
    return int(max(1, min(tb, n)))


def image_processing_forward(x: jax.Array) -> jax.Array:
    """Equivalent of ImageProcessing.forward.

    x: (N, 1, H, W) float32 (or bfloat16) -> (N, 1, H, W) of the same dtype.
    """
    n, c, h, w = x.shape
    assert c == 1, "KV filter conv expects a single input channel"

    out_dtype = x.dtype
    in_item = jnp.dtype(x.dtype).itemsize
    out_item = jnp.dtype(out_dtype).itemsize

    tb = _pick_batch_block(n, h, w, in_item, out_item)
    grid = (pl.cdiv(n, tb),)

    macs_per_pixel = 10 + 6                       # separable shifted-add MACs
    flops = n * h * w * (2 * macs_per_pixel + 1)  # MACs x2 + final 1/12 scale
    bytes_accessed = n * h * w * (in_item + out_item)

    return pl.pallas_call(
        _kv_conv_kernel,
        out_shape=jax.ShapeDtypeStruct((n, c, h, w), out_dtype),
        grid_spec=pltpu.PrefetchScalarGridSpec(
            num_scalar_prefetch=0,
            grid=grid,
            in_specs=[pl.BlockSpec((tb, 1, h, w), lambda g: (g, 0, 0, 0))],
            out_specs=pl.BlockSpec((tb, 1, h, w), lambda g: (g, 0, 0, 0)),
            scratch_shapes=[
                pltpu.VMEM((tb, h + 4, w + 4), jnp.float32),   # zero-padded image
                pltpu.VMEM((tb, 2, h + 4, w), jnp.float32),    # row-pass intermediates
            ],
        ),
        compiler_params=pltpu.CompilerParams(
            dimension_semantics=("parallel",),
            vmem_limit_bytes=48 * 1024 * 1024,
        ),
        cost_estimate=pl.CostEstimate(
            flops=flops, transcendentals=0, bytes_accessed=bytes_accessed),
    )(x)


def _reference_np(x: np.ndarray) -> np.ndarray:
    """Exact (float64) reference for F.conv2d with the KV filter, pad=2."""
    kv = _KV * _KV_SCALE
    xnp = x.astype(np.float64)[:, 0]
    n, h, w = xnp.shape
    xpad = np.pad(xnp, ((0, 0), (_PAD, _PAD), (_PAD, _PAD)))
    out = np.zeros((n, h, w), dtype=np.float64)
    for dy in range(5):
        for dx in range(5):
            out += kv[dy, dx] * xpad[:, dy:dy + h, dx:dx + w]
    return out[:, None].astype(np.float32)


if __name__ == "__main__":
    key = jax.random.PRNGKey(0)
    # KV filter conv operates on single-channel images.
    x = jax.random.normal(key, (2, 1, 16, 16), dtype=jnp.float32)

    y = image_processing_forward(x)
    y = jax.block_until_ready(y)

    y_ref = _reference_np(np.asarray(x))
    assert y.shape == (2, 1, 16, 16)
    assert np.allclose(np.asarray(y).astype(np.float32), y_ref, atol=1e-5, rtol=1e-5)

    print("KERNEL_OK")
</pallas_src>

<mosaic_0001>
module attributes {stable_mosaic.version = 11 : i64} {
  func.func @_kv_conv_kernel(%arg0: i32, %arg1: memref<2x1x16x16xf32, #tpu.memory_space<vmem>>, %arg2: memref<2x1x16x16xf32, #tpu.memory_space<vmem>>, %arg3: memref<2x20x20xf32, #tpu.memory_space<vmem>>, %arg4: memref<2x2x20x16xf32, #tpu.memory_space<vmem>>) attributes {dimension_semantics = [#tpu.dimension_semantics<parallel>], iteration_bounds = array<i64: 1>, scalar_prefetch = 0 : i64, scratch_operands = 2 : i64, tpu.core_type = #tpu.core_type<tc>, window_params = [{transform_indices = @transform_0, window_bounds = array<i64: 2, 1, 16, 16>}, {transform_indices = @transform_1, window_bounds = array<i64: 2, 1, 16, 16>}]} {
    %cst = arith.constant 0.000000e+00 : f32
    %0 = vector.broadcast %cst : f32 to vector<2x2x20xf32>
    %c0 = arith.constant 0 : index
    %c0_0 = arith.constant 0 : index
    %c0_1 = arith.constant 0 : index
    %1 = vector.load %arg3[%c0, %c0_0, %c0_1] : memref<2x20x20xf32, #tpu.memory_space<vmem>>, vector<2x2x20xf32>
    tpu.vector_store %arg3[%c0, %c0_0, %c0_1], %0 {strides = array<i32>} : memref<2x20x20xf32, #tpu.memory_space<vmem>>, vector<2x2x20xf32>,
    %cst_2 = arith.constant 0.000000e+00 : f32
    %2 = vector.broadcast %cst_2 : f32 to vector<2x2x20xf32>
    %c0_3 = arith.constant 0 : index
    %c18 = arith.constant 18 : index
    %c0_4 = arith.constant 0 : index
    %3 = vector.load %arg3[%c0_3, %c18, %c0_4] : memref<2x20x20xf32, #tpu.memory_space<vmem>>, vector<2x2x20xf32>
    tpu.vector_store %arg3[%c0_3, %c18, %c0_4], %2 {strides = array<i32>} : memref<2x20x20xf32, #tpu.memory_space<vmem>>, vector<2x2x20xf32>,
    %cst_5 = arith.constant 0.000000e+00 : f32
    %4 = vector.broadcast %cst_5 : f32 to vector<2x20x2xf32>
    %c0_6 = arith.constant 0 : index
    %c0_7 = arith.constant 0 : index
    %c0_8 = arith.constant 0 : index
    %5 = vector.load %arg3[%c0_6, %c0_7, %c0_8] : memref<2x20x20xf32, #tpu.memory_space<vmem>>, vector<2x20x2xf32>
    tpu.vector_store %arg3[%c0_6, %c0_7, %c0_8], %4 {strides = array<i32>} : memref<2x20x20xf32, #tpu.memory_space<vmem>>, vector<2x20x2xf32>,
    %cst_9 = arith.constant 0.000000e+00 : f32
    %6 = vector.broadcast %cst_9 : f32 to vector<2x20x2xf32>
    %c0_10 = arith.constant 0 : index
    %c0_11 = arith.constant 0 : index
    %c18_12 = arith.constant 18 : index
    %7 = vector.load %arg3[%c0_10, %c0_11, %c18_12] : memref<2x20x20xf32, #tpu.memory_space<vmem>>, vector<2x20x2xf32>
    tpu.vector_store %arg3[%c0_10, %c0_11, %c18_12], %6 {strides = array<i32>} : memref<2x20x20xf32, #tpu.memory_space<vmem>>, vector<2x20x2xf32>,
    %c0_13 = arith.constant 0 : index
    %c0_14 = arith.constant 0 : index
    %c0_15 = arith.constant 0 : index
    %c0_16 = arith.constant 0 : index
    %8 = vector.load %arg1[%c0_13, %c0_14, %c0_15, %c0_16] : memref<2x1x16x16xf32, #tpu.memory_space<vmem>>, vector<2x1x16x16xf32>
    %9 = vector.shape_cast %8 : vector<2x1x16x16xf32> to vector<2x16x16xf32>
    %c0_17 = arith.constant 0 : index
    %c2 = arith.constant 2 : index
    %c2_18 = arith.constant 2 : index
    %10 = vector.load %arg3[%c0_17, %c2, %c2_18] : memref<2x20x20xf32, #tpu.memory_space<vmem>>, vector<2x16x16xf32>
    tpu.vector_store %arg3[%c0_17, %c2, %c2_18], %9 {strides = array<i32>} : memref<2x20x20xf32, #tpu.memory_space<vmem>>, vector<2x16x16xf32>,
    %cst_19 = arith.constant 0.000000e+00 : f32
    %11 = vector.broadcast %cst_19 : f32 to vector<2x20x16xf32>
    %cst_20 = arith.constant 0.000000e+00 : f32
    %12 = vector.broadcast %cst_20 : f32 to vector<2x20x16xf32>
    %c0_21 = arith.constant 0 : index
    %c0_22 = arith.constant 0 : index
    %c0_23 = arith.constant 0 : index
    %13 = vector.load %arg3[%c0_21, %c0_22, %c0_23] : memref<2x20x20xf32, #tpu.memory_space<vmem>>, vector<2x20x16xf32>
    %cst_24 = arith.constant -1.000000e+00 : f32
    %14 = vector.broadcast %cst_24 : f32 to vector<2x20x16xf32>
    %15 = arith.mulf %14, %13 : vector<2x20x16xf32>
    %16 = arith.addf %11, %15 : vector<2x20x16xf32>
    %cst_25 = arith.constant 2.000000e+00 : f32
    %17 = vector.broadcast %cst_25 : f32 to vector<2x20x16xf32>
    %18 = arith.mulf %17, %13 : vector<2x20x16xf32>
    %19 = arith.addf %12, %18 : vector<2x20x16xf32>
    %c0_26 = arith.constant 0 : index
    %c0_27 = arith.constant 0 : index
    %c1 = arith.constant 1 : index
    %20 = vector.load %arg3[%c0_26, %c0_27, %c1] : memref<2x20x20xf32, #tpu.memory_space<vmem>>, vector<2x20x16xf32>
    %cst_28 = arith.constant 2.000000e+00 : f32
    %21 = vector.broadcast %cst_28 : f32 to vector<2x20x16xf32>
    %22 = arith.mulf %21, %20 : vector<2x20x16xf32>
    %23 = arith.addf %16, %22 : vector<2x20x16xf32>
    %cst_29 = arith.constant -6.000000e+00 : f32
    %24 = vector.broadcast %cst_29 : f32 to vector<2x20x16xf32>
    %25 = arith.mulf %24, %20 : vector<2x20x16xf32>
    %26 = arith.addf %19, %25 : vector<2x20x16xf32>
    %c0_30 = arith.constant 0 : index
    %c0_31 = arith.constant 0 : index
    %c2_32 = arith.constant 2 : index
    %27 = vector.load %arg3[%c0_30, %c0_31, %c2_32] : memref<2x20x20xf32, #tpu.memory_space<vmem>>, vector<2x20x16xf32>
    %cst_33 = arith.constant -2.000000e+00 : f32
    %28 = vector.broadcast %cst_33 : f32 to vector<2x20x16xf32>
    %29 = arith.mulf %28, %27 : vector<2x20x16xf32>
    %30 = arith.addf %23, %29 : vector<2x20x16xf32>
    %cst_34 = arith.constant 8.000000e+00 : f32
    %31 = vector.broadcast %cst_34 : f32 to vector<2x20x16xf32>
    %32 = arith.mulf %31, %27 : vector<2x20x16xf32>
    %33 = arith.addf %26, %32 : vector<2x20x16xf32>
    %c0_35 = arith.constant 0 : index
    %c0_36 = arith.constant 0 : index
    %c3 = arith.constant 3 : index
    %34 = vector.load %arg3[%c0_35, %c0_36, %c3] : memref<2x20x20xf32, #tpu.memory_space<vmem>>, vector<2x20x16xf32>
    %cst_37 = arith.constant 2.000000e+00 : f32
    %35 = vector.broadcast %cst_37 : f32 to vector<2x20x16xf32>
    %36 = arith.mulf %35, %34 : vector<2x20x16xf32>
    %37 = arith.addf %30, %36 : vector<2x20x16xf32>
    %cst_38 = arith.constant -6.000000e+00 : f32
    %38 = vector.broadcast %cst_38 : f32 to vector<2x20x16xf32>
    %39 = arith.mulf %38, %34 : vector<2x20x16xf32>
    %40 = arith.addf %33, %39 : vector<2x20x16xf32>
    %c0_39 = arith.constant 0 : index
    %c0_40 = arith.constant 0 : index
    %c4 = arith.constant 4 : index
    %41 = vector.load %arg3[%c0_39, %c0_40, %c4] : memref<2x20x20xf32, #tpu.memory_space<vmem>>, vector<2x20x16xf32>
    %cst_41 = arith.constant -1.000000e+00 : f32
    %42 = vector.broadcast %cst_41 : f32 to vector<2x20x16xf32>
    %43 = arith.mulf %42, %41 : vector<2x20x16xf32>
    %44 = arith.addf %37, %43 : vector<2x20x16xf32>
    %cst_42 = arith.constant 2.000000e+00 : f32
    %45 = vector.broadcast %cst_42 : f32 to vector<2x20x16xf32>
    %46 = arith.mulf %45, %41 : vector<2x20x16xf32>
    %47 = arith.addf %40, %46 : vector<2x20x16xf32>
    %c0_43 = arith.constant 0 : index
    %c0_44 = arith.constant 0 : index
    %c0_45 = arith.constant 0 : index
    %c0_46 = arith.constant 0 : index
    %48 = vector.load %arg4[%c0_43, %c0_44, %c0_45, %c0_46] : memref<2x2x20x16xf32, #tpu.memory_space<vmem>>, vector<2x1x20x16xf32>
    %49 = vector.shape_cast %48 : vector<2x1x20x16xf32> to vector<2x20x16xf32>
    %50 = vector.shape_cast %44 : vector<2x20x16xf32> to vector<2x1x20x16xf32>
    tpu.vector_store %arg4[%c0_43, %c0_44, %c0_45, %c0_46], %50 {strides = array<i32>} : memref<2x2x20x16xf32, #tpu.memory_space<vmem>>, vector<2x1x20x16xf32>,
    %c0_47 = arith.constant 0 : index
    %c1_48 = arith.constant 1 : index
    %c0_49 = arith.constant 0 : index
    %c0_50 = arith.constant 0 : index
    %51 = vector.load %arg4[%c0_47, %c1_48, %c0_49, %c0_50] : memref<2x2x20x16xf32, #tpu.memory_space<vmem>>, vector<2x1x20x16xf32>
    %52 = vector.shape_cast %51 : vector<2x1x20x16xf32> to vector<2x20x16xf32>
    %53 = vector.shape_cast %47 : vector<2x20x16xf32> to vector<2x1x20x16xf32>
    tpu.vector_store %arg4[%c0_47, %c1_48, %c0_49, %c0_50], %53 {strides = array<i32>} : memref<2x2x20x16xf32, #tpu.memory_space<vmem>>, vector<2x1x20x16xf32>,
    %cst_51 = arith.constant 0.000000e+00 : f32
    %54 = vector.broadcast %cst_51 : f32 to vector<2x16x16xf32>
    %c0_52 = arith.constant 0 : index
    %c0_53 = arith.constant 0 : index
    %c0_54 = arith.constant 0 : index
    %c0_55 = arith.constant 0 : index
    %55 = vector.load %arg4[%c0_52, %c0_53, %c0_54, %c0_55] : memref<2x2x20x16xf32, #tpu.memory_space<vmem>>, vector<2x1x16x16xf32>
    %56 = vector.shape_cast %55 : vector<2x1x16x16xf32> to vector<2x16x16xf32>
    %cst_56 = arith.constant 1.000000e+00 : f32
    %57 = vector.broadcast %cst_56 : f32 to vector<2x16x16xf32>
    %58 = arith.mulf %57, %56 : vector<2x16x16xf32>
    %59 = arith.addf %54, %58 : vector<2x16x16xf32>
    %c0_57 = arith.constant 0 : index
    %c1_58 = arith.constant 1 : index
    %c1_59 = arith.constant 1 : index
    %c0_60 = arith.constant 0 : index
    %60 = vector.load %arg4[%c0_57, %c1_58, %c1_59, %c0_60] : memref<2x2x20x16xf32, #tpu.memory_space<vmem>>, vector<2x1x16x16xf32>
    %61 = vector.shape_cast %60 : vector<2x1x16x16xf32> to vector<2x16x16xf32>
    %cst_61 = arith.constant 1.000000e+00 : f32
    %62 = vector.broadcast %cst_61 : f32 to vector<2x16x16xf32>
    %63 = arith.mulf %62, %61 : vector<2x16x16xf32>
    %64 = arith.addf %59, %63 : vector<2x16x16xf32>
    %c0_62 = arith.constant 0 : index
    %c0_63 = arith.constant 0 : index
    %c2_64 = arith.constant 2 : index
    %c0_65 = arith.constant 0 : index
    %65 = vector.load %arg4[%c0_62, %c0_63, %c2_64, %c0_65] : memref<2x2x20x16xf32, #tpu.memory_space<vmem>>, vector<2x1x16x16xf32>
    %66 = vector.shape_cast %65 : vector<2x1x16x16xf32> to vector<2x16x16xf32>
    %cst_66 = arith.constant -2.000000e+00 : f32
    %67 = vector.broadcast %cst_66 : f32 to vector<2x16x16xf32>
    %68 = arith.mulf %67, %66 : vector<2x16x16xf32>
    %69 = arith.addf %64, %68 : vector<2x16x16xf32>
    %c0_67 = arith.constant 0 : index
    %c1_68 = arith.constant 1 : index
    %c2_69 = arith.constant 2 : index
    %c0_70 = arith.constant 0 : index
    %70 = vector.load %arg4[%c0_67, %c1_68, %c2_69, %c0_70] : memref<2x2x20x16xf32, #tpu.memory_space<vmem>>, vector<2x1x16x16xf32>
    %71 = vector.shape_cast %70 : vector<2x1x16x16xf32> to vector<2x16x16xf32>
    %cst_71 = arith.constant -2.000000e+00 : f32
    %72 = vector.broadcast %cst_71 : f32 to vector<2x16x16xf32>
    %73 = arith.mulf %72, %71 : vector<2x16x16xf32>
    %74 = arith.addf %69, %73 : vector<2x16x16xf32>
    %c0_72 = arith.constant 0 : index
    %c1_73 = arith.constant 1 : index
    %c3_74 = arith.constant 3 : index
    %c0_75 = arith.constant 0 : index
    %75 = vector.load %arg4[%c0_72, %c1_73, %c3_74, %c0_75] : memref<2x2x20x16xf32, #tpu.memory_space<vmem>>, vector<2x1x16x16xf32>
    %76 = vector.shape_cast %75 : vector<2x1x16x16xf32> to vector<2x16x16xf32>
    %cst_76 = arith.constant 1.000000e+00 : f32
    %77 = vector.broadcast %cst_76 : f32 to vector<2x16x16xf32>
    %78 = arith.mulf %77, %76 : vector<2x16x16xf32>
    %79 = arith.addf %74, %78 : vector<2x16x16xf32>
    %c0_77 = arith.constant 0 : index
    %c0_78 = arith.constant 0 : index
    %c4_79 = arith.constant 4 : index
    %c0_80 = arith.constant 0 : index
    %80 = vector.load %arg4[%c0_77, %c0_78, %c4_79, %c0_80] : memref<2x2x20x16xf32, #tpu.memory_space<vmem>>, vector<2x1x16x16xf32>
    %81 = vector.shape_cast %80 : vector<2x1x16x16xf32> to vector<2x16x16xf32>
    %cst_81 = arith.constant 1.000000e+00 : f32
    %82 = vector.broadcast %cst_81 : f32 to vector<2x16x16xf32>
    %83 = arith.mulf %82, %81 : vector<2x16x16xf32>
    %84 = arith.addf %79, %83 : vector<2x16x16xf32>
    %cst_82 = arith.constant 0.0833333358 : f32
    %85 = vector.broadcast %cst_82 : f32 to vector<2x16x16xf32>
    %86 = arith.mulf %84, %85 : vector<2x16x16xf32>
    %c0_83 = arith.constant 0 : index
    %c0_84 = arith.constant 0 : index
    %c0_85 = arith.constant 0 : index
    %c0_86 = arith.constant 0 : index
    %87 = vector.load %arg2[%c0_83, %c0_84, %c0_85, %c0_86] : memref<2x1x16x16xf32, #tpu.memory_space<vmem>>, vector<2x1x16x16xf32>
    %88 = vector.shape_cast %87 : vector<2x1x16x16xf32> to vector<2x16x16xf32>
    %89 = vector.shape_cast %86 : vector<2x16x16xf32> to vector<2x1x16x16xf32>
    tpu.vector_store %arg2[%c0_83, %c0_84, %c0_85, %c0_86], %89 {strides = array<i32>} : memref<2x1x16x16xf32, #tpu.memory_space<vmem>>, vector<2x1x16x16xf32>,
    return
  }
  func.func @transform_0(%arg0: i32) -> (i32, i32, i32, i32) {
    %c0_i32 = arith.constant 0 : i32
    %c0_i32_0 = arith.constant 0 : i32
    %c0_i32_1 = arith.constant 0 : i32
    %c0_i32_2 = arith.constant 0 : i32
    return %arg0, %c0_i32, %c0_i32_0, %c0_i32_1 : i32, i32, i32, i32
  }
  func.func @transform_1(%arg0: i32) -> (i32, i32, i32, i32) {
    %c0_i32 = arith.constant 0 : i32
    %c0_i32_0 = arith.constant 0 : i32
    %c0_i32_1 = arith.constant 0 : i32
    %c0_i32_2 = arith.constant 0 : i32
    return %arg0, %c0_i32, %c0_i32_0, %c0_i32_1 : i32, i32, i32, i32
  }
}

</mosaic_0001>

<llo_original>
// kernel: tpu_custom_call.1
$region0: #{tpu_custom_call.1}
  #allocation0 [shape = 'u32[]', space=smem, size = 0x4, offset = 0x4, fixed_abs, tag = 'smem constant byte address 0x4 - core index']
  #allocation1 [shape = 'u32[144,128]{1,0:T(1,128)}', space=vmem, size = 0x12000, scoped, tag = 'internal scratch']
  #allocation2 [shape = 'f32[2,20,20]{2,1,0:T(8,128)}', space=vmem, size = 0x6000, scoped, tag = 'scratch operand']
  #allocation3 [shape = 'f32[2,2,20,16]{3,2,1,0:T(8,128)}', space=vmem, size = 0xc000, scoped, tag = 'scratch operand']
  %s0 = inlined_call_operand.hbm [shape: f32[2,1,16,16], index: 0, kind: input, shape index: {}]
  %s1 = inlined_call_operand.hbm [shape: f32[2,1,16,16], index: 1, kind: output, shape index: {}]
  %s2 = sld [smem:[#allocation0]]
  $region18: #{tpu_custom_call.1} parent=0
    _
  %s4 = ssub.s32 1, %s2
  %s5 = scalar_select 0, %s4, %s2
  $region1: #{tpu_custom_call.1} parent=0
    #allocation4 [shape = 'u8[16384]{0}', space=vmem, size = 0x4000, scoped, tag = 'input window, operand 0, single buffered']
    #allocation5 [shape = 's32[1]{0}', space=sflag, size = 0x4, scoped, tag = 'scoped memory for tpu_custom_call.1']
    #allocation6 [shape = 's32[1]{0}', space=sflag, size = 0x4, scoped, tag = 'scoped memory for tpu_custom_call.1']
    #allocation7 [shape = 'u8[16384]{0}', space=vmem, size = 0x4000, scoped, tag = 'output window, operand 0, single buffered']
    %6 = vsyncpa [#allocation5], 0
    %7 = vsyncpa [#allocation6], 0
    // Predicated region
    $region2: #{tpu_custom_call.1} parent=1 // pred_check
      _
    $region3: #{tpu_custom_call.1} parent=1 // pred_check_branch
      %9 = sbr.rel (0) target = $region5
    $region4: #{tpu_custom_call.1} parent=1 // pred_region
      %s11 = ssub.s32 512, 512
      %12 = vsyncadd [#allocation5], %s11
      %s13 = sshll.u32 [#allocation4], 4
      %s14 = int_to_ptr.vmem [resolvable:$true] %s13
      %19 = dma.hbm_to_vmem [thread:$0]  %s0, 512, %s14, [#allocation5], 128, 128, 8
    $region5: #{tpu_custom_call.1} parent=1 // pred_fallthru
      _
    // Predicated region
    $region6: #{tpu_custom_call.1} parent=1 // pred_check
      _
    $region7: #{tpu_custom_call.1} parent=1 // pred_check_branch
      %21 = sbr.rel (0) target = $region9
    $region8: #{tpu_custom_call.1} parent=1 // pred_region
      %22 = dma.done [#allocation5], 512
    $region9: #{tpu_custom_call.1} parent=1 // pred_fallthru
      _
    %vm23 = vcmask 156672
    %24 = vst.msk [vmem:[#allocation2] sm:$0x3] %vm23, 0.0
    %25 = vst.msk [vmem:[#allocation2 + $0x18] sm:$0x3] %vm23, 0.0
    %26 = vst.msk [vmem:[#allocation2 + $0x12] sm:$0x3] %vm23, 0.0
    %27 = vst.msk [vmem:[#allocation2 + $0x2a] sm:$0x3] %vm23, 0.0
    %vm28 = vcmask 15360
    %29 = vst.msk [vmem:[#allocation2] sm:$0xff] %vm28, 0.0
    %30 = vst.msk [vmem:[#allocation2 + $0x8] sm:$0xff] %vm28, 0.0
    %vm31 = vcmask 11264
    %32 = vst.msk [vmem:[#allocation2 + $0x10] sm:$0xf] %vm31, 0.0
    %33 = vst.msk [vmem:[#allocation2 + $0x18] sm:$0xff] %vm28, 0.0
    %34 = vst.msk [vmem:[#allocation2 + $0x20] sm:$0xff] %vm28, 0.0
    %35 = vst.msk [vmem:[#allocation2 + $0x28] sm:$0xf] %vm31, 0.0
    %vm36 = vcmask 162960
    %37 = vst.msk [vmem:[#allocation2] sm:$0xff] %vm36, 0.0
    %38 = vst.msk [vmem:[#allocation2 + $0x8] sm:$0xff] %vm36, 0.0
    %vm39 = vcmask 158864
    %40 = vst.msk [vmem:[#allocation2 + $0x10] sm:$0xf] %vm39, 0.0
    %41 = vst.msk [vmem:[#allocation2 + $0x18] sm:$0xff] %vm36, 0.0
    %42 = vst.msk [vmem:[#allocation2 + $0x20] sm:$0xff] %vm36, 0.0
    %43 = vst.msk [vmem:[#allocation2 + $0x28] sm:$0xf] %vm39, 0.0
    %v44 = vld [vmem:[#allocation4] sm:$0xff]
    %v45 = vld [vmem:[#allocation4 + $0x8] sm:$0xff]
    %v46 = vld [vmem:[#allocation4 + $0x10] sm:$0xff]
    %v47 = vld [vmem:[#allocation4 + $0x18] sm:$0xff]
    %52 = vrot.lane.b32.xlu0 %v44, 2
    %v53 = vpop.permute.xlu0 %52
    %54 = vrot.lane.b32.xlu0 %v45, 2
    %v55 = vpop.permute.xlu0 %54
    %56 = vrot.lane.b32.xlu0 %v46, 2
    %v57 = vpop.permute.xlu0 %56
    %58 = vrot.lane.b32.xlu0 %v47, 2
    %v59 = vpop.permute.xlu0 %58
    %vm64 = vcmask 146448
    %65 = vst.msk [vmem:[#allocation2 + $0x2] sm:$0xff] %vm64, %v53
    %66 = vst.msk [vmem:[#allocation2 + $0xa] sm:$0xff] %vm64, %v55
    %67 = vst.msk [vmem:[#allocation2 + $0x1a] sm:$0xff] %vm64, %v57
    %68 = vst.msk [vmem:[#allocation2 + $0x22] sm:$0xff] %vm64, %v59
    %v69 = vld [vmem:[#allocation2] sm:$0xff]
    %v70 = vld [vmem:[#allocation2 + $0x8] sm:$0xff]
    %v71 = vld [vmem:[#allocation2 + $0x10] sm:$0xf]
    %v72 = vld [vmem:[#allocation2 + $0x18] sm:$0xff]
    %v73 = vld [vmem:[#allocation2 + $0x20] sm:$0xff]
    %v74 = vld [vmem:[#allocation2 + $0x28] sm:$0xf]
    %v75 = vmul.f32 %v69, -1.0
    %v76 = vmul.f32 %v70, -1.0
    %v77 = vmul.f32 %v71, -1.0
    %v78 = vmul.f32 %v72, -1.0
    %v79 = vmul.f32 %v73, -1.0
    %v80 = vmul.f32 %v74, -1.0
    %v81 = vadd.f32 %v75, 0.0
    %v82 = vadd.f32 %v76, 0.0
    %v83 = vadd.f32 %v77, 0.0
    %v84 = vadd.f32 %v78, 0.0
    %v85 = vadd.f32 %v79, 0.0
    %v86 = vadd.f32 %v80, 0.0
    %v87 = vmul.f32 %v69, 2.0
    %v88 = vmul.f32 %v70, 2.0
    %v89 = vmul.f32 %v71, 2.0
    %v90 = vmul.f32 %v72, 2.0
    %v91 = vmul.f32 %v73, 2.0
    %v92 = vmul.f32 %v74, 2.0
    %v93 = vadd.f32 %v87, 0.0
    %v94 = vadd.f32 %v88, 0.0
    %v95 = vadd.f32 %v89, 0.0
    %v96 = vadd.f32 %v90, 0.0
    %v97 = vadd.f32 %v91, 0.0
    %v98 = vadd.f32 %v92, 0.0
    %105 = vrot.lane.b32.xlu0 %v87, 127
    %v106 = vpop.permute.xlu0 %105
    %107 = vrot.lane.b32.xlu0 %v88, 127
    %v108 = vpop.permute.xlu0 %107
    %109 = vrot.lane.b32.xlu0 %v89, 127
    %v110 = vpop.permute.xlu0 %109
    %111 = vrot.lane.b32.xlu0 %v90, 127
    %v112 = vpop.permute.xlu0 %111
    %113 = vrot.lane.b32.xlu0 %v91, 127
    %v114 = vpop.permute.xlu0 %113
    %115 = vrot.lane.b32.xlu0 %v92, 127
    %v116 = vpop.permute.xlu0 %115
    %v123 = vadd.f32 %v81, %v106
    %v124 = vadd.f32 %v82, %v108
    %v125 = vadd.f32 %v83, %v110
    %v126 = vadd.f32 %v84, %v112
    %v127 = vadd.f32 %v85, %v114
    %v128 = vadd.f32 %v86, %v116
    %v129 = vmul.f32 %v69, -6.0
    %v130 = vmul.f32 %v70, -6.0
    %v131 = vmul.f32 %v71, -6.0
    %v132 = vmul.f32 %v72, -6.0
    %v133 = vmul.f32 %v73, -6.0
    %v134 = vmul.f32 %v74, -6.0
    %141 = vrot.lane.b32.xlu0 %v129, 127
    %v142 = vpop.permute.xlu0 %141
    %143 = vrot.lane.b32.xlu0 %v130, 127
    %v144 = vpop.permute.xlu0 %143
    %145 = vrot.lane.b32.xlu0 %v131, 127
    %v146 = vpop.permute.xlu0 %145
    %147 = vrot.lane.b32.xlu0 %v132, 127
    %v148 = vpop.permute.xlu0 %147
    %149 = vrot.lane.b32.xlu0 %v133, 127
    %v150 = vpop.permute.xlu0 %149
    %151 = vrot.lane.b32.xlu0 %v134, 127
    %v152 = vpop.permute.xlu0 %151
    %v159 = vadd.f32 %v93, %v142
    %v160 = vadd.f32 %v94, %v144
    %v161 = vadd.f32 %v95, %v146
    %v162 = vadd.f32 %v96, %v148
    %v163 = vadd.f32 %v97, %v150
    %v164 = vadd.f32 %v98, %v152
    %v165 = vmul.f32 %v69, -2.0
    %v166 = vmul.f32 %v70, -2.0
    %v167 = vmul.f32 %v71, -2.0
    %v168 = vmul.f32 %v72, -2.0
    %v169 = vmul.f32 %v73, -2.0
    %v170 = vmul.f32 %v74, -2.0
    %177 = vrot.lane.b32.xlu0 %v165, 126
    %v178 = vpop.permute.xlu0 %177
    %179 = vrot.lane.b32.xlu0 %v166, 126
    %v180 = vpop.permute.xlu0 %179
    %181 = vrot.lane.b32.xlu0 %v167, 126
    %v182 = vpop.permute.xlu0 %181
    %183 = vrot.lane.b32.xlu0 %v168, 126
    %v184 = vpop.permute.xlu0 %183
    %185 = vrot.lane.b32.xlu0 %v169, 126
    %v186 = vpop.permute.xlu0 %185
    %187 = vrot.lane.b32.xlu0 %v170, 126
    %v188 = vpop.permute.xlu0 %187
    %v195 = vadd.f32 %v123, %v178
    %v196 = vadd.f32 %v124, %v180
    %v197 = vadd.f32 %v125, %v182
    %v198 = vadd.f32 %v126, %v184
    %v199 = vadd.f32 %v127, %v186
    %v200 = vadd.f32 %v128, %v188
    %v201 = vmul.f32 %v69, 8.0
    %v202 = vmul.f32 %v70, 8.0
    %v203 = vmul.f32 %v71, 8.0
    %v204 = vmul.f32 %v72, 8.0
    %v205 = vmul.f32 %v73, 8.0
    %v206 = vmul.f32 %v74, 8.0
    %213 = vrot.lane.b32.xlu0 %v201, 126
    %v214 = vpop.permute.xlu0 %213
    %215 = vrot.lane.b32.xlu0 %v202, 126
    %v216 = vpop.permute.xlu0 %215
    %217 = vrot.lane.b32.xlu0 %v203, 126
    %v218 = vpop.permute.xlu0 %217
    %219 = vrot.lane.b32.xlu0 %v204, 126
    %v220 = vpop.permute.xlu0 %219
    %221 = vrot.lane.b32.xlu0 %v205, 126
    %v222 = vpop.permute.xlu0 %221
    %223 = vrot.lane.b32.xlu0 %v206, 126
    %v224 = vpop.permute.xlu0 %223
    %v231 = vadd.f32 %v159, %v214
    %v232 = vadd.f32 %v160, %v216
    %v233 = vadd.f32 %v161, %v218
    %v234 = vadd.f32 %v162, %v220
    %v235 = vadd.f32 %v163, %v222
    %v236 = vadd.f32 %v164, %v224
    %237 = vrot.lane.b32.xlu0 %v87, 125
    %v238 = vpop.permute.xlu0 %237
    %239 = vrot.lane.b32.xlu0 %v88, 125
    %v240 = vpop.permute.xlu0 %239
    %241 = vrot.lane.b32.xlu0 %v89, 125
    %v242 = vpop.permute.xlu0 %241
    %243 = vrot.lane.b32.xlu0 %v90, 125
    %v244 = vpop.permute.xlu0 %243
    %245 = vrot.lane.b32.xlu0 %v91, 125
    %v246 = vpop.permute.xlu0 %245
    %247 = vrot.lane.b32.xlu0 %v92, 125
    %v248 = vpop.permute.xlu0 %247
    %v255 = vadd.f32 %v195, %v238
    %v256 = vadd.f32 %v196, %v240
    %v257 = vadd.f32 %v197, %v242
    %v258 = vadd.f32 %v198, %v244
    %v259 = vadd.f32 %v199, %v246
    %v260 = vadd.f32 %v200, %v248
    %261 = vrot.lane.b32.xlu0 %v129, 125
    %v262 = vpop.permute.xlu0 %261
    %263 = vrot.lane.b32.xlu0 %v130, 125
    %v264 = vpop.permute.xlu0 %263
    %265 = vrot.lane.b32.xlu0 %v131, 125
    %v266 = vpop.permute.xlu0 %265
    %267 = vrot.lane.b32.xlu0 %v132, 125
    %v268 = vpop.permute.xlu0 %267
    %269 = vrot.lane.b32.xlu0 %v133, 125
    %v270 = vpop.permute.xlu0 %269
    %271 = vrot.lane.b32.xlu0 %v134, 125
    %v272 = vpop.permute.xlu0 %271
    %v279 = vadd.f32 %v231, %v262
    %v280 = vadd.f32 %v232, %v264
    %v281 = vadd.f32 %v233, %v266
    %v282 = vadd.f32 %v234, %v268
    %v283 = vadd.f32 %v235, %v270
    %v284 = vadd.f32 %v236, %v272
    %291 = vrot.lane.b32.xlu0 %v75, 124
    %v292 = vpop.permute.xlu0 %291
    %293 = vrot.lane.b32.xlu0 %v76, 124
    %v294 = vpop.permute.xlu0 %293
    %295 = vrot.lane.b32.xlu0 %v77, 124
    %v296 = vpop.permute.xlu0 %295
    %297 = vrot.lane.b32.xlu0 %v78, 124
    %v298 = vpop.permute.xlu0 %297
    %299 = vrot.lane.b32.xlu0 %v79, 124
    %v300 = vpop.permute.xlu0 %299
    %301 = vrot.lane.b32.xlu0 %v80, 124
    %v302 = vpop.permute.xlu0 %301
    %v309 = vadd.f32 %v255, %v292
    %v310 = vadd.f32 %v256, %v294
    %v311 = vadd.f32 %v257, %v296
    %v312 = vadd.f32 %v258, %v298
    %v313 = vadd.f32 %v259, %v300
    %v314 = vadd.f32 %v260, %v302
    %315 = vrot.lane.b32.xlu0 %v87, 124
    %v316 = vpop.permute.xlu0 %315
    %317 = vrot.lane.b32.xlu0 %v88, 124
    %v318 = vpop.permute.xlu0 %317
    %319 = vrot.lane.b32.xlu0 %v89, 124
    %v320 = vpop.permute.xlu0 %319
    %321 = vrot.lane.b32.xlu0 %v90, 124
    %v322 = vpop.permute.xlu0 %321
    %323 = vrot.lane.b32.xlu0 %v91, 124
    %v324 = vpop.permute.xlu0 %323
    %325 = vrot.lane.b32.xlu0 %v92, 124
    %v326 = vpop.permute.xlu0 %325
    %v333 = vadd.f32 %v279, %v316
    %v334 = vadd.f32 %v280, %v318
    %v335 = vadd.f32 %v281, %v320
    %v336 = vadd.f32 %v282, %v322
    %v337 = vadd.f32 %v283, %v324
    %v338 = vadd.f32 %v284, %v326
    %vm339 = vcmask 130048
    %340 = vst.msk [vmem:[#allocation3] sm:$0xff] %vm339, %v309
    %341 = vst.msk [vmem:[#allocation3 + $0x8] sm:$0xff] %vm339, %v310
    %vm342 = vcmask 125952
    %343 = vst.msk [vmem:[#allocation3 + $0x10] sm:$0xf] %vm342, %v311
    %344 = vst.msk [vmem:[#allocation3 + $0x30] sm:$0xff] %vm339, %v312
    %345 = vst.msk [vmem:[#allocation3 + $0x38] sm:$0xff] %vm339, %v313
    %346 = vst.msk [vmem:[#allocation3 + $0x40] sm:$0xf] %vm342, %v314
    %s347 = scalar_lea.vmem [#allocation3], 24
    %348 = vst.msk [vmem:[%s347] sm:$0xff] %vm339, %v333
    %349 = vst.msk [vmem:[%s347 + $0x8] sm:$0xff] %vm339, %v334
    %350 = vst.msk [vmem:[%s347 + $0x10] sm:$0xf] %vm342, %v335
    %351 = vst.msk [vmem:[%s347 + $0x30] sm:$0xff] %vm339, %v336
    %352 = vst.msk [vmem:[%s347 + $0x38] sm:$0xff] %vm339, %v337
    %353 = vst.msk [vmem:[%s347 + $0x40] sm:$0xf] %vm342, %v338
    %v354 = vld [vmem:[#allocation3] sm:$0xff]
    %v355 = vld [vmem:[#allocation3 + $0x8] sm:$0xff]
    %v356 = vld [vmem:[#allocation3 + $0x30] sm:$0xff]
    %v357 = vld [vmem:[#allocation3 + $0x38] sm:$0xff]
    %v358 = vadd.f32 %v354, 0.0
    %v359 = vadd.f32 %v355, 0.0
    %v360 = vadd.f32 %v356, 0.0
    %v361 = vadd.f32 %v357, 0.0
    %v362 = vld [vmem:[%s347 + $0x1] sm:$0xff]
    %v363 = vld [vmem:[%s347 + $0x9] sm:$0xff]
    %v364 = vld [vmem:[%s347 + $0x31] sm:$0xff]
    %v365 = vld [vmem:[%s347 + $0x39] sm:$0xff]
    %v366 = vadd.f32 %v358, %v362
    %v367 = vadd.f32 %v359, %v363
    %v368 = vadd.f32 %v360, %v364
    %v369 = vadd.f32 %v361, %v365
    %v370 = vld [vmem:[#allocation3 + $0x2] sm:$0xff]
    %v371 = vld [vmem:[#allocation3 + $0xa] sm:$0xff]
    %v372 = vld [vmem:[#allocation3 + $0x32] sm:$0xff]
    %v373 = vld [vmem:[#allocation3 + $0x3a] sm:$0xff]
    %v374 = vmul.f32 %v370, -2.0
    %v375 = vmul.f32 %v371, -2.0
    %v376 = vmul.f32 %v372, -2.0
    %v377 = vmul.f32 %v373, -2.0
    %v378 = vadd.f32 %v366, %v374
    %v379 = vadd.f32 %v367, %v375
    %v380 = vadd.f32 %v368, %v376
    %v381 = vadd.f32 %v369, %v377
    %v382 = vld [vmem:[%s347 + $0x2] sm:$0xff]
    %v383 = vld [vmem:[%s347 + $0xa] sm:$0xff]
    %v384 = vld [vmem:[%s347 + $0x32] sm:$0xff]
    %v385 = vld [vmem:[%s347 + $0x3a] sm:$0xff]
    %v386 = vmul.f32 %v382, -2.0
    %v387 = vmul.f32 %v383, -2.0
    %v388 = vmul.f32 %v384, -2.0
    %v389 = vmul.f32 %v385, -2.0
    %v390 = vadd.f32 %v378, %v386
    %v391 = vadd.f32 %v379, %v387
    %v392 = vadd.f32 %v380, %v388
    %v393 = vadd.f32 %v381, %v389
    %v394 = vld [vmem:[%s347 + $0x3] sm:$0xff]
    %v395 = vld [vmem:[%s347 + $0xb] sm:$0xff]
    %v396 = vld [vmem:[%s347 + $0x33] sm:$0xff]
    %v397 = vld [vmem:[%s347 + $0x3b] sm:$0xff]
    %v398 = vadd.f32 %v390, %v394
    %v399 = vadd.f32 %v391, %v395
    %v400 = vadd.f32 %v392, %v396
    %v401 = vadd.f32 %v393, %v397
    %v402 = vld [vmem:[#allocation3 + $0x4] sm:$0xff]
    %v403 = vld [vmem:[#allocation3 + $0xc] sm:$0xff]
    %v404 = vld [vmem:[#allocation3 + $0x34] sm:$0xff]
    %v405 = vld [vmem:[#allocation3 + $0x3c] sm:$0xff]
    %v406 = vadd.f32 %v398, %v402
    %v407 = vadd.f32 %v399, %v403
    %v408 = vadd.f32 %v400, %v404
    %v409 = vadd.f32 %v401, %v405
    %v410 = vmul.f32 %v406, 0.083333336
    %v411 = vmul.f32 %v407, 0.083333336
    %v412 = vmul.f32 %v408, 0.083333336
    %v413 = vmul.f32 %v409, 0.083333336
    %414 = vst.msk [vmem:[#allocation7] sm:$0xff] %vm339, %v410
    %415 = vst.msk [vmem:[#allocation7 + $0x8] sm:$0xff] %vm339, %v411
    %416 = vst.msk [vmem:[#allocation7 + $0x10] sm:$0xff] %vm339, %v412
    %417 = vst.msk [vmem:[#allocation7 + $0x18] sm:$0xff] %vm339, %v413
    // Predicated region
    $region10: #{tpu_custom_call.1} parent=1 // pred_check
      _
    $region11: #{tpu_custom_call.1} parent=1 // pred_check_branch
      %419 = sbr.rel (0) target = $region13
    $region12: #{tpu_custom_call.1} parent=1 // pred_region
      %s421 = ssub.s32 512, 512
      %422 = vsyncadd [#allocation6], %s421
      %s423 = sshll.u32 [#allocation7], 4
      %s424 = int_to_ptr.vmem [resolvable:$true] %s423
      %429 = dma.vmem_to_hbm [thread:$0]  %s424, 512, %s1, [#allocation6], 128, 128, 8
    $region13: #{tpu_custom_call.1} parent=1 // pred_fallthru
      _
    // Predicated region
    $region14: #{tpu_custom_call.1} parent=1 // pred_check
      _
    $region15: #{tpu_custom_call.1} parent=1 // pred_check_branch
      %431 = sbr.rel (0) target = $region17
    $region16: #{tpu_custom_call.1} parent=1 // pred_region
      %432 = dma.done [#allocation6], 512
    $region17: #{tpu_custom_call.1} parent=1 // pred_fallthru
      _
    %433 = vsyncpa [#allocation5], 1
    %434 = vsyncpa [#allocation6], 1

</llo_original>
